<compile_context>
chip_gen: v7x
topology: tpu7x:2x2x1
jax: 0.10.0
libtpu: 0.0.40
codegen_flags: <defaults>
</compile_context>

<pallas_src>
import jax
import jax.numpy as jnp
from jax.experimental import pallas as pl
from jax.experimental.pallas import tpu as pltpu


# ---------------------------------------------------------------------------
# Pallas kernel: tiled identity copy (debug/device-touch path only).
# ---------------------------------------------------------------------------
def _copy_kernel(x_ref, o_ref):
    # TODO(synk): MLF_unit.forward contains no tensor compute (it returns an
    # empty Python list); the only expressible device op is an identity copy.
    o_ref[...] = x_ref[...]


def _pick_tile(dim, unit, cap):
    """Largest multiple of `unit` that divides `dim` and is <= `cap`.

    Falls back to the full extent (always legal on TPU) when `dim` is not a
    multiple of `unit`.
    """
    if dim % unit != 0:
        return dim
    t = min(cap, dim)
    t -= t % unit
    while dim % t != 0:
        t -= unit
    return t


def _flatten_lane_dense(x):
    """Flatten NCHW -> 2-D with a 128-aligned (lane-dense) last dim when possible."""
    n, c, h, w = x.shape
    if (h * w) % 128 == 0:
        return x.reshape(n * c, h * w)
    if (c * h * w) % 128 == 0:
        return x.reshape(n, c * h * w)
    return x.reshape(1, n * c * h * w)


def mlf_device_touch(x_2d):
    """Tiled, double-buffered, input-aliased identity pass through VMEM.

    Tiles: sublane dim a multiple of 8 (<=512), lane dim a multiple of 128
    (<=2048) -> tile <= 4 MiB f32, so <=~16 MiB resident with double
    buffering — safe against v7x's 64 MiB physical VMEM as well as v5e/v6e
    scoped defaults.  Both grid axes are 'parallel' so v7x shards across its
    2 TensorCores.  input_output_aliases makes the identity (at most) an
    in-place write instead of a full read+write of a fresh buffer.
    """
    r, c = x_2d.shape
    tr = _pick_tile(r, 8, 512)
    tc = _pick_tile(c, 128, 2048)
    grid = (r // tr, c // tc)
    return pl.pallas_call(
        _copy_kernel,
        out_shape=jax.ShapeDtypeStruct((r, c), x_2d.dtype),
        grid=grid,
        in_specs=[pl.BlockSpec((tr, tc), lambda i, j: (i, j))],
        out_specs=pl.BlockSpec((tr, tc), lambda i, j: (i, j)),
        input_output_aliases={0: 0},
        compiler_params=pltpu.CompilerParams(
            dimension_semantics=("parallel", "parallel"),
            vmem_limit_bytes=32 * 1024 * 1024,
        ),
    )(x_2d)


# ---------------------------------------------------------------------------
# Module wrapper.
# ---------------------------------------------------------------------------
class MLFUnit:
    """JAX/Pallas port of MLF_unit.

    Parameters are stored exactly as in the PyTorch __init__, but (as in the
    reference) they are never used by forward().
    """

    def __init__(self, vtr, m, theta_star, delta, Isyn_pre, Gsyn_pre, gleak):
        self.vtr = vtr
        self.m = m
        self.theta_star = theta_star
        self.delta = delta
        self.Isyn_pre = Isyn_pre
        self.Gsyn_pre = Gsyn_pre
        self.gleak = gleak

    def forward(self, x, debug_device_touch=False):
        # Exact reference semantics: no tensor computation, return an empty
        # list.  No kernel launch, no HBM traffic, no host sync on the hot
        # path (per the performance review).
        if debug_device_touch:
            # Optional debug-only device touch (identity pass through VMEM).
            _ = mlf_device_touch(_flatten_lane_dense(x))
        firetime = []
        return firetime


if __name__ == "__main__":
    key = jax.random.PRNGKey(0)
    # Small NCHW input consistent with a CIFAR-10-style spiking layer.
    x = jax.random.normal(key, (2, 4, 16, 16), dtype=jnp.float32)

    unit = MLFUnit(
        vtr=0.3,
        m=3,
        theta_star=1.0,
        delta=0.5,
        Isyn_pre=0.2,
        Gsyn_pre=0.1,
        gleak=0.05,
    )

    # Forward: must match the reference exactly (empty list, no device work).
    firetime = unit.forward(x)
    assert isinstance(firetime, list) and len(firetime) == 0

    # Exercise the Pallas TPU path once from the test harness (not forward),
    # block on it, and verify the identity copy is bit-exact.
    x_2d = _flatten_lane_dense(x)
    y_2d = mlf_device_touch(x_2d)
    jax.block_until_ready(y_2d)
    assert bool(jnp.array_equal(y_2d, _flatten_lane_dense(x)))

    print("KERNEL_OK")
</pallas_src>

<mosaic_0001>
module attributes {stable_mosaic.version = 11 : i64} {
  func.func @_copy_kernel(%arg0: i32, %arg1: i32, %arg2: memref<8x256xf32, #tpu.memory_space<vmem>>, %arg3: memref<8x256xf32, #tpu.memory_space<vmem>>) attributes {dimension_semantics = [#tpu.dimension_semantics<parallel>, #tpu.dimension_semantics<parallel>], iteration_bounds = array<i64: 1, 1>, scalar_prefetch = 0 : i64, scratch_operands = 0 : i64, tpu.core_type = #tpu.core_type<tc>, window_params = [{transform_indices = @transform_0, window_bounds = array<i64: 8, 256>}, {transform_indices = @transform_1, window_bounds = array<i64: 8, 256>}]} {
    %c0 = arith.constant 0 : index
    %c0_0 = arith.constant 0 : index
    %0 = vector.load %arg2[%c0, %c0_0] : memref<8x256xf32, #tpu.memory_space<vmem>>, vector<8x256xf32>
    %c0_1 = arith.constant 0 : index
    %c0_2 = arith.constant 0 : index
    %1 = vector.load %arg3[%c0_1, %c0_2] : memref<8x256xf32, #tpu.memory_space<vmem>>, vector<8x256xf32>
    tpu.vector_store %arg3[%c0_1, %c0_2], %0 {strides = array<i32>} : memref<8x256xf32, #tpu.memory_space<vmem>>, vector<8x256xf32>,
    return
  }
  func.func @transform_0(%arg0: i32, %arg1: i32) -> (i32, i32) {
    %c0_i32 = arith.constant 0 : i32
    return %arg0, %arg1 : i32, i32
  }
  func.func @transform_1(%arg0: i32, %arg1: i32) -> (i32, i32) {
    %c0_i32 = arith.constant 0 : i32
    return %arg0, %arg1 : i32, i32
  }
}

</mosaic_0001>

<llo_original>
// kernel: tpu_custom_call.1
$region0: #{tpu_custom_call.1}
  #allocation0 [shape = 'u32[]', space=smem, size = 0x4, offset = 0x4, fixed_abs, tag = 'smem constant byte address 0x4 - core index']
  #allocation1 [shape = 'u32[144,128]{1,0:T(1,128)}', space=vmem, size = 0x12000, scoped, tag = 'internal scratch']
  %s0 = inlined_call_operand.hbm [shape: f32[8,256], index: 0, kind: input, shape index: {}, may-alias: {0,1}]
  %s1 = inlined_call_operand.hbm [shape: f32[8,256], index: 1, kind: output, shape index: {}, may-alias: {0,1}]
  %s2 = sld [smem:[#allocation0]]
  $region18: #{tpu_custom_call.1} parent=0
    _
  %s4 = ssub.s32 1, %s2
  %s5 = scalar_select 0, %s4, %s2
  $region1: #{tpu_custom_call.1} parent=0
    #allocation2 [shape = 'u8[8192]{0}', space=vmem, size = 0x2000, scoped, tag = 'input window, operand 0, single buffered']
    #allocation3 [shape = 's32[1]{0}', space=sflag, size = 0x4, scoped, tag = 'scoped memory for tpu_custom_call.1']
    #allocation4 [shape = 's32[1]{0}', space=sflag, size = 0x4, scoped, tag = 'scoped memory for tpu_custom_call.1']
    #allocation5 [shape = 'u8[8192]{0}', space=vmem, size = 0x2000, scoped, tag = 'output window, operand 0, single buffered']
    %6 = vsyncpa [#allocation3], 0
    %7 = vsyncpa [#allocation4], 0
    // Predicated region
    $region2: #{tpu_custom_call.1} parent=1 // pred_check
      _
    $region3: #{tpu_custom_call.1} parent=1 // pred_check_branch
      %9 = sbr.rel (0) target = $region5
    $region4: #{tpu_custom_call.1} parent=1 // pred_region
      %s11 = ssub.s32 256, 256
      %12 = vsyncadd [#allocation3], %s11
      %s14 = sshll.u32 [#allocation2], 4
      %s15 = int_to_ptr.vmem [resolvable:$true] %s14
      %17 = dma.hbm_to_vmem [thread:$0]  %s0, 256, %s15, [#allocation3]
    $region5: #{tpu_custom_call.1} parent=1 // pred_fallthru
      _
    // Predicated region
    $region6: #{tpu_custom_call.1} parent=1 // pred_check
      _
    $region7: #{tpu_custom_call.1} parent=1 // pred_check_branch
      %19 = sbr.rel (0) target = $region9
    $region8: #{tpu_custom_call.1} parent=1 // pred_region
      %20 = dma.done [#allocation3], 256
    $region9: #{tpu_custom_call.1} parent=1 // pred_fallthru
      _
    %v21 = vld [vmem:[#allocation2] sm:$0xff]
    %v22 = vld [vmem:[#allocation2 + $0x8] sm:$0xff]
    %23 = vst [vmem:[#allocation5] sm:$0xff] %v21
    %24 = vst [vmem:[#allocation5 + $0x8] sm:$0xff] %v22
    // Predicated region
    $region10: #{tpu_custom_call.1} parent=1 // pred_check
      _
    $region11: #{tpu_custom_call.1} parent=1 // pred_check_branch
      %26 = sbr.rel (0) target = $region13
    $region12: #{tpu_custom_call.1} parent=1 // pred_region
      %s28 = ssub.s32 256, 256
      %29 = vsyncadd [#allocation4], %s28
      %s31 = sshll.u32 [#allocation5], 4
      %s32 = int_to_ptr.vmem [resolvable:$true] %s31
      %34 = dma.vmem_to_hbm [thread:$0]  %s32, 256, %s1, [#allocation4]
    $region13: #{tpu_custom_call.1} parent=1 // pred_fallthru
      _
    // Predicated region
    $region14: #{tpu_custom_call.1} parent=1 // pred_check
      _
    $region15: #{tpu_custom_call.1} parent=1 // pred_check_branch
      %36 = sbr.rel (0) target = $region17
    $region16: #{tpu_custom_call.1} parent=1 // pred_region
      %37 = dma.done [#allocation4], 256
    $region17: #{tpu_custom_call.1} parent=1 // pred_fallthru
      _
    %38 = vsyncpa [#allocation3], 1
    %39 = vsyncpa [#allocation4], 1

</llo_original>
